<compile_context>
chip_gen: v7x
topology: tpu7x:2x2x1
jax: 0.10.0
libtpu: 0.0.40
codegen_flags: <defaults>
</compile_context>

<pallas_src>
import functools

import jax
import jax.numpy as jnp
from jax.experimental import pallas as pl
from jax.experimental.pallas import tpu as pltpu

IN_FEATURES = 2
OUT_FEATURES = 2
HIDDEN = 256
NEG_SLOPE = 0.01


def _leaky_relu(x):
    # For slope < 1 this is identical to where(x > 0, x, slope*x), one VALU op cheaper.
    return jnp.maximum(x, NEG_SLOPE * x)


def soh_kernel(x_ref,
               w0_ref, b0_ref,
               w1_ref, b1_ref,
               w2_ref, b2_ref,
               o_ref):
    # x: (block_b, IN) f32, batch on sublanes.  Weights stored (in, out).
    x = x_ref[...]

    # Layer 0 on the VPU: K = IN_FEATURES = 2 is degenerate for the MXU, so do
    # it as IN_FEATURES broadcasted multiply-adds (frees the MXU push slot).
    h = b0_ref[...]                                  # (1, HIDDEN), broadcasts over sublanes
    w0 = w0_ref[...]                                 # (IN, HIDDEN) f32
    for k in range(IN_FEATURES):
        h = h + x[:, k:k + 1] * w0[k:k + 1, :]       # (block_b, HIDDEN)
    h = _leaky_relu(h)

    # Layer 1: (block_b, 256) @ (256, 256) on the MXU, bf16 operands, f32 accum.
    h = jnp.dot(h.astype(jnp.bfloat16), w1_ref[...],
                preferred_element_type=jnp.float32) + b1_ref[...]
    h = _leaky_relu(h)

    # Layer 2: (block_b, 256) @ (256, OUT) -> (block_b, OUT); w2 is the small
    # stationary operand.  Then Sigmoid on the EUP (exp + approx reciprocal).
    z = jnp.dot(h.astype(jnp.bfloat16), w2_ref[...],
                preferred_element_type=jnp.float32) + b2_ref[...]
    o_ref[...] = pl.reciprocal(1.0 + jnp.exp(-z), approx=True).astype(o_ref.dtype)


def _round_up(n, m):
    return ((n + m - 1) // m) * m


def _default_block_b(batch):
    bp = _round_up(batch, 8)
    # Single tile for small batches; 1024-wide tiles otherwise (≈3.5 MB of
    # intermediates, safely inside even v5e's 16 MiB default scoped VMEM) so
    # large batches get multiple "parallel" grid steps for v7x's two TCs.
    return bp if bp <= 1024 else 1024


@functools.partial(jax.jit, static_argnames=("block_b",))
def soh_simulate(x, params, *, block_b=None):
    """Forward pass of SoHSimulate. x: (B, IN_FEATURES) f32 -> (B, OUT_FEATURES)."""
    B, F = x.shape
    assert F == IN_FEATURES
    (w0, b0), (w1, b1), (w2, b2) = params

    if block_b is None:
        block_b = _default_block_b(B)
    n_blk = pl.cdiv(B, block_b)
    Bp = n_blk * block_b
    if Bp != B:
        # Tail columns are independent garbage zeros; sliced off below.
        x = jnp.pad(x, ((0, Bp - B), (0, 0)))

    def full_spec(arr):
        # Full-array resident block (weights/biases stay in VMEM across the grid).
        return pl.BlockSpec(arr.shape, lambda i: (0, 0))

    flops = 2 * Bp * (IN_FEATURES * HIDDEN + HIDDEN * HIDDEN + HIDDEN * OUT_FEATURES)
    bytes_accessed = (Bp * IN_FEATURES * 4 + Bp * OUT_FEATURES * 4
                      + w0.size * 4 + b0.size * 4
                      + w1.size * 2 + b1.size * 4
                      + w2.size * 2 + b2.size * 4)

    out = pl.pallas_call(
        soh_kernel,
        out_shape=jax.ShapeDtypeStruct((Bp, OUT_FEATURES), x.dtype),
        grid_spec=pltpu.PrefetchScalarGridSpec(
            num_scalar_prefetch=0,
            grid=(n_blk,),
            in_specs=[
                pl.BlockSpec((block_b, IN_FEATURES), lambda i: (i, 0)),
                full_spec(w0), full_spec(b0),
                full_spec(w1), full_spec(b1),
                full_spec(w2), full_spec(b2),
            ],
            out_specs=pl.BlockSpec((block_b, OUT_FEATURES), lambda i: (i, 0)),
        ),
        compiler_params=pltpu.CompilerParams(
            dimension_semantics=("parallel",)),
        cost_estimate=pl.CostEstimate(
            flops=flops,
            transcendentals=2 * Bp * OUT_FEATURES,   # exp + reciprocal
            bytes_accessed=bytes_accessed),
    )(x, w0, b0, w1, b1, w2, b2)

    return out[:B]


def init_params(key):
    """PyTorch nn.Linear default init (U[-1/sqrt(fan_in), +1/sqrt(fan_in)]).
    Weights are stored TRANSPOSED as (in, out) so the kernel's h @ W form needs
    no in-kernel transpose; biases are (1, out).  The two 256-wide matmul
    weights are bf16 for the MXU; layer-0 (VPU path) stays f32."""
    dims = [(IN_FEATURES, HIDDEN), (HIDDEN, HIDDEN), (HIDDEN, OUT_FEATURES)]
    params = []
    for li, (fan_in, fan_out) in enumerate(dims):
        key, kw, kb = jax.random.split(key, 3)
        bound = float(fan_in) ** -0.5
        w = jax.random.uniform(kw, (fan_in, fan_out), jnp.float32, -bound, bound)
        b = jax.random.uniform(kb, (1, fan_out), jnp.float32, -bound, bound)
        if li > 0:
            w = w.astype(jnp.bfloat16)
        params.append((w, b))
    return params


def reference_forward(x, params):
    """Pure-JAX reference with the same precision recipe as the kernel."""
    (w0, b0), (w1, b1), (w2, b2) = params
    h = x @ w0 + b0
    h = _leaky_relu(h)
    h = jnp.dot(h.astype(jnp.bfloat16), w1,
                preferred_element_type=jnp.float32) + b1
    h = _leaky_relu(h)
    z = jnp.dot(h.astype(jnp.bfloat16), w2,
                preferred_element_type=jnp.float32) + b2
    return 1.0 / (1.0 + jnp.exp(-z))


if __name__ == "__main__":
    key = jax.random.PRNGKey(0)
    kx, kp = jax.random.split(key)

    batch = 8   # small smoke-test shape; block_b auto-scales with batch
    x = jax.random.normal(kx, (batch, IN_FEATURES), jnp.float32)
    params = init_params(kp)

    out = jax.block_until_ready(soh_simulate(x, params))

    ref = reference_forward(x, params)
    assert out.shape == (batch, OUT_FEATURES)
    assert jnp.allclose(out, ref, atol=2e-3, rtol=2e-3), \
        float(jnp.max(jnp.abs(out - ref)))

    print("KERNEL_OK")
</pallas_src>

<mosaic_0001>
module attributes {stable_mosaic.version = 11 : i64} {
  func.func @soh_kernel(%arg0: i32, %arg1: memref<8x2xf32, #tpu.memory_space<vmem>>, %arg2: memref<2x256xf32, #tpu.memory_space<vmem>>, %arg3: memref<1x256xf32, #tpu.memory_space<vmem>>, %arg4: memref<256x256xbf16, #tpu.memory_space<vmem>>, %arg5: memref<1x256xf32, #tpu.memory_space<vmem>>, %arg6: memref<256x2xbf16, #tpu.memory_space<vmem>>, %arg7: memref<1x2xf32, #tpu.memory_space<vmem>>, %arg8: memref<8x2xf32, #tpu.memory_space<vmem>>) attributes {dimension_semantics = [#tpu.dimension_semantics<parallel>], iteration_bounds = array<i64: 1>, scalar_prefetch = 0 : i64, scratch_operands = 0 : i64, tpu.core_type = #tpu.core_type<tc>, window_params = [{transform_indices = @transform_0, window_bounds = array<i64: 8, 2>}, {pipeline_mode = #tpu.pipeline_mode<synchronous>, transform_indices = @transform_1, window_bounds = array<i64: 2, 256>}, {pipeline_mode = #tpu.pipeline_mode<synchronous>, transform_indices = @transform_2, window_bounds = array<i64: 1, 256>}, {pipeline_mode = #tpu.pipeline_mode<synchronous>, transform_indices = @transform_3, window_bounds = array<i64: 256, 256>}, {pipeline_mode = #tpu.pipeline_mode<synchronous>, transform_indices = @transform_4, window_bounds = array<i64: 1, 256>}, {pipeline_mode = #tpu.pipeline_mode<synchronous>, transform_indices = @transform_5, window_bounds = array<i64: 256, 2>}, {pipeline_mode = #tpu.pipeline_mode<synchronous>, transform_indices = @transform_6, window_bounds = array<i64: 1, 2>}, {transform_indices = @transform_7, window_bounds = array<i64: 8, 2>}]} {
    %c0 = arith.constant 0 : index
    %c0_0 = arith.constant 0 : index
    %0 = vector.load %arg1[%c0, %c0_0] : memref<8x2xf32, #tpu.memory_space<vmem>>, vector<8x2xf32>
    %c0_1 = arith.constant 0 : index
    %c0_2 = arith.constant 0 : index
    %1 = vector.load %arg3[%c0_1, %c0_2] : memref<1x256xf32, #tpu.memory_space<vmem>>, vector<1x256xf32>
    %c0_3 = arith.constant 0 : index
    %c0_4 = arith.constant 0 : index
    %2 = vector.load %arg2[%c0_3, %c0_4] : memref<2x256xf32, #tpu.memory_space<vmem>>, vector<2x256xf32>
    %3 = vector.extract_strided_slice %0 {offsets = [0, 0], sizes = [8, 1], strides = [1, 1]} : vector<8x2xf32> to vector<8x1xf32>
    %4 = vector.extract_strided_slice %2 {offsets = [0, 0], sizes = [1, 256], strides = [1, 1]} : vector<2x256xf32> to vector<1x256xf32>
    %5 = vector.broadcast %3 : vector<8x1xf32> to vector<8x256xf32>
    %6 = vector.broadcast %4 : vector<1x256xf32> to vector<8x256xf32>
    %7 = arith.mulf %5, %6 : vector<8x256xf32>
    %8 = vector.broadcast %1 : vector<1x256xf32> to vector<8x256xf32>
    %9 = arith.addf %8, %7 : vector<8x256xf32>
    %10 = vector.extract_strided_slice %0 {offsets = [0, 1], sizes = [8, 1], strides = [1, 1]} : vector<8x2xf32> to vector<8x1xf32>
    %11 = vector.extract_strided_slice %2 {offsets = [1, 0], sizes = [1, 256], strides = [1, 1]} : vector<2x256xf32> to vector<1x256xf32>
    %12 = vector.broadcast %10 : vector<8x1xf32> to vector<8x256xf32>
    %13 = vector.broadcast %11 : vector<1x256xf32> to vector<8x256xf32>
    %14 = arith.mulf %12, %13 : vector<8x256xf32>
    %15 = arith.addf %9, %14 : vector<8x256xf32>
    %cst = arith.constant 0.00999999977 : f32
    %16 = vector.broadcast %cst : f32 to vector<8x256xf32>
    %17 = arith.mulf %16, %15 : vector<8x256xf32>
    %18 = arith.maximumf %15, %17 : vector<8x256xf32>
    %19 = arith.truncf %18 : vector<8x256xf32> to vector<8x256xbf16>
    %c0_5 = arith.constant 0 : index
    %c0_6 = arith.constant 0 : index
    %20 = vector.load %arg4[%c0_5, %c0_6] : memref<256x256xbf16, #tpu.memory_space<vmem>>, vector<256x256xbf16>
    %cst_7 = arith.constant dense<0.000000e+00> : vector<8x256xf32>
    %21 = tpu.matmul %19, %20, %cst_7 {dimension_numbers = #tpu.dot_dimension_numbers<[1], [0], [0], [1], [0, 0, 1, 1], [], []>} : vector<8x256xbf16>, vector<256x256xbf16>, vector<8x256xf32> -> vector<8x256xf32>
    %c0_8 = arith.constant 0 : index
    %c0_9 = arith.constant 0 : index
    %22 = vector.load %arg5[%c0_8, %c0_9] : memref<1x256xf32, #tpu.memory_space<vmem>>, vector<1x256xf32>
    %23 = vector.broadcast %22 : vector<1x256xf32> to vector<8x256xf32>
    %24 = arith.addf %21, %23 : vector<8x256xf32>
    %cst_10 = arith.constant 0.00999999977 : f32
    %25 = vector.broadcast %cst_10 : f32 to vector<8x256xf32>
    %26 = arith.mulf %25, %24 : vector<8x256xf32>
    %27 = arith.maximumf %24, %26 : vector<8x256xf32>
    %28 = arith.truncf %27 : vector<8x256xf32> to vector<8x256xbf16>
    %c0_11 = arith.constant 0 : index
    %c0_12 = arith.constant 0 : index
    %29 = vector.load %arg6[%c0_11, %c0_12] : memref<256x2xbf16, #tpu.memory_space<vmem>>, vector<256x2xbf16>
    %cst_13 = arith.constant dense<0.000000e+00> : vector<8x2xf32>
    %30 = tpu.matmul %28, %29, %cst_13 {dimension_numbers = #tpu.dot_dimension_numbers<[1], [0], [0], [1], [0, 0, 1, 1], [], []>} : vector<8x256xbf16>, vector<256x2xbf16>, vector<8x2xf32> -> vector<8x2xf32>
    %c0_14 = arith.constant 0 : index
    %c0_15 = arith.constant 0 : index
    %31 = vector.load %arg7[%c0_14, %c0_15] : memref<1x2xf32, #tpu.memory_space<vmem>>, vector<1x2xf32>
    %32 = vector.broadcast %31 : vector<1x2xf32> to vector<8x2xf32>
    %33 = arith.addf %30, %32 : vector<8x2xf32>
    %cst_16 = arith.constant 0.000000e+00 : f32
    %34 = vector.broadcast %cst_16 : f32 to vector<8x2xf32>
    %35 = arith.subf %34, %33 : vector<8x2xf32>
    %36 = math.exp %35 : vector<8x2xf32>
    %cst_17 = arith.constant 1.000000e+00 : f32
    %37 = vector.broadcast %cst_17 : f32 to vector<8x2xf32>
    %38 = arith.addf %37, %36 : vector<8x2xf32>
    %39 = tpu.reciprocal %38 {approx = true} : vector<8x2xf32> -> vector<8x2xf32>
    %c0_18 = arith.constant 0 : index
    %c0_19 = arith.constant 0 : index
    %40 = vector.load %arg8[%c0_18, %c0_19] : memref<8x2xf32, #tpu.memory_space<vmem>>, vector<8x2xf32>
    tpu.vector_store %arg8[%c0_18, %c0_19], %39 {strides = array<i32>} : memref<8x2xf32, #tpu.memory_space<vmem>>, vector<8x2xf32>,
    return
  }
  func.func @transform_0(%arg0: i32) -> (i32, i32) {
    %c0_i32 = arith.constant 0 : i32
    %c0_i32_0 = arith.constant 0 : i32
    return %arg0, %c0_i32 : i32, i32
  }
  func.func @transform_1(%arg0: i32) -> (i32, i32) {
    %c0_i32 = arith.constant 0 : i32
    %c0_i32_0 = arith.constant 0 : i32
    %c0_i32_1 = arith.constant 0 : i32
    return %c0_i32, %c0_i32_0 : i32, i32
  }
  func.func @transform_2(%arg0: i32) -> (i32, i32) {
    %c0_i32 = arith.constant 0 : i32
    %c0_i32_0 = arith.constant 0 : i32
    %c0_i32_1 = arith.constant 0 : i32
    return %c0_i32, %c0_i32_0 : i32, i32
  }
  func.func @transform_3(%arg0: i32) -> (i32, i32) {
    %c0_i32 = arith.constant 0 : i32
    %c0_i32_0 = arith.constant 0 : i32
    %c0_i32_1 = arith.constant 0 : i32
    return %c0_i32, %c0_i32_0 : i32, i32
  }
  func.func @transform_4(%arg0: i32) -> (i32, i32) {
    %c0_i32 = arith.constant 0 : i32
    %c0_i32_0 = arith.constant 0 : i32
    %c0_i32_1 = arith.constant 0 : i32
    return %c0_i32, %c0_i32_0 : i32, i32
  }
  func.func @transform_5(%arg0: i32) -> (i32, i32) {
    %c0_i32 = arith.constant 0 : i32
    %c0_i32_0 = arith.constant 0 : i32
    %c0_i32_1 = arith.constant 0 : i32
    return %c0_i32, %c0_i32_0 : i32, i32
  }
  func.func @transform_6(%arg0: i32) -> (i32, i32) {
    %c0_i32 = arith.constant 0 : i32
    %c0_i32_0 = arith.constant 0 : i32
    %c0_i32_1 = arith.constant 0 : i32
    return %c0_i32, %c0_i32_0 : i32, i32
  }
  func.func @transform_7(%arg0: i32) -> (i32, i32) {
    %c0_i32 = arith.constant 0 : i32
    %c0_i32_0 = arith.constant 0 : i32
    return %arg0, %c0_i32 : i32, i32
  }
}

</mosaic_0001>

<llo_original>
// kernel: soh_simulate.1
$region0: #{soh_simulate.1}
  #allocation0 [shape = 'u32[]', space=smem, size = 0x4, offset = 0x4, fixed_abs, tag = 'smem constant byte address 0x4 - core index']
  #allocation1 [shape = 'u32[144,128]{1,0:T(1,128)}', space=vmem, size = 0x12000, scoped, tag = 'internal scratch']
  %s0 = inlined_call_operand.vmem [shape: f32[8,2], index: 0, kind: input, shape index: {}]
  %s1 = inlined_call_operand.vmem [shape: f32[2,256], index: 1, kind: input, shape index: {}]
  %s2 = inlined_call_operand.vmem [shape: f32[1,256], index: 2, kind: input, shape index: {}]
  %s3 = inlined_call_operand.hbm [shape: bf16[256,256], index: 3, kind: input, shape index: {}]
  %s4 = inlined_call_operand.vmem [shape: f32[1,256], index: 4, kind: input, shape index: {}]
  %s5 = inlined_call_operand.vmem [shape: bf16[256,2], index: 5, kind: input, shape index: {}]
  %s6 = inlined_call_operand.vmem [shape: f32[1,2], index: 6, kind: input, shape index: {}]
  %s7 = inlined_call_operand.vmem [shape: f32[8,2], index: 7, kind: output, shape index: {}]
  %s8 = sld [smem:[#allocation0]]
  $region42: #{soh_simulate.1} parent=0
    _
  %s10 = ssub.s32 1, %s8
  %s11 = scalar_select 0, %s10, %s8
  $region1: #{soh_simulate.1} parent=0
    #allocation2 [shape = 'u8[131072]{0}', space=vmem, size = 0x20000, scoped, tag = 'input window, operand 3, single buffered']
    #allocation3 [shape = 's32[1]{0}', space=sflag, size = 0x4, scoped, tag = 'scoped memory for soh_simulate.1']
    %12 = vsyncpa [#allocation3], 0
    // Predicated region
    $region2: #{soh_simulate.1} parent=1 // pred_check
      _
    $region3: #{soh_simulate.1} parent=1 // pred_check_branch
      %14 = sbr.rel (0) target = $region5
    $region4: #{soh_simulate.1} parent=1 // pred_region
      _
    $region5: #{soh_simulate.1} parent=1 // pred_fallthru
      _
    // Predicated region
    $region6: #{soh_simulate.1} parent=1 // pred_check
      _
    $region7: #{soh_simulate.1} parent=1 // pred_check_branch
      %16 = sbr.rel (0) target = $region9
    $region8: #{soh_simulate.1} parent=1 // pred_region
      _
    $region9: #{soh_simulate.1} parent=1 // pred_fallthru
      _
    // Predicated region
    $region10: #{soh_simulate.1} parent=1 // pred_check
      _
    $region11: #{soh_simulate.1} parent=1 // pred_check_branch
      %18 = sbr.rel (0) target = $region13
    $region12: #{soh_simulate.1} parent=1 // pred_region
      _
    $region13: #{soh_simulate.1} parent=1 // pred_fallthru
      _
    // Predicated region
    $region14: #{soh_simulate.1} parent=1 // pred_check
      _
    $region15: #{soh_simulate.1} parent=1 // pred_check_branch
      %20 = sbr.rel (0) target = $region17
    $region16: #{soh_simulate.1} parent=1 // pred_region
      %s22 = ssub.s32 4096, 4096
      %23 = vsyncadd [#allocation3], %s22
      %s24 = sshll.u32 [#allocation2], 4
      %s25 = int_to_ptr.vmem [resolvable:$true] %s24
      %30 = dma.hbm_to_vmem [thread:$0]  %s3, 4096, %s25, [#allocation3], 128, 128, 8
    $region17: #{soh_simulate.1} parent=1 // pred_fallthru
      _
    // Predicated region
    $region18: #{soh_simulate.1} parent=1 // pred_check
      _
    $region19: #{soh_simulate.1} parent=1 // pred_check_branch
      %32 = sbr.rel (0) target = $region21
    $region20: #{soh_simulate.1} parent=1 // pred_region
      _
    $region21: #{soh_simulate.1} parent=1 // pred_fallthru
      _
    // Predicated region
    $region22: #{soh_simulate.1} parent=1 // pred_check
      _
    $region23: #{soh_simulate.1} parent=1 // pred_check_branch
      %34 = sbr.rel (0) target = $region25
    $region24: #{soh_simulate.1} parent=1 // pred_region
      _
    $region25: #{soh_simulate.1} parent=1 // pred_fallthru
      _
    // Predicated region
    $region26: #{soh_simulate.1} parent=1 // pred_check
      _
    $region27: #{soh_simulate.1} parent=1 // pred_check_branch
      %36 = sbr.rel (0) target = $region29
    $region28: #{soh_simulate.1} parent=1 // pred_region
      _
    $region29: #{soh_simulate.1} parent=1 // pred_fallthru
      _
    // Predicated region
    $region30: #{soh_simulate.1} parent=1 // pred_check
      _
    $region31: #{soh_simulate.1} parent=1 // pred_check_branch
      %38 = sbr.rel (0) target = $region33
    $region32: #{soh_simulate.1} parent=1 // pred_region
      %39 = dma.done [#allocation3], 4096
    $region33: #{soh_simulate.1} parent=1 // pred_fallthru
      _
    %v41 = vld [vmem:[%s0] sm:$0xff]
    %v42 = vld [vmem:[%s2] sm:$0x3]
    %v43 = vld [vmem:[%s1] sm:$0xf]
    %45 = vset.pattern.permute.xlu0 0
    %46 = vperm.xlu0 %45, %v41
    %v47 = vpop.permute.xlu0 %46
    %v50 = vlaneseq
    %v51 = vshrl.u32 %v50, 7
    %v52 = vsub.s32 0, %v51
    %v53 = vrot.slane %v43, %v52
    %v54 = vlaneseq
    %v55 = vshrl.u32 %v54, 7
    %v56 = vsub.s32 2, %v55
    %v57 = vrot.slane %v43, %v56
    %v60 = vlaneseq
    %v61 = vshrl.u32 %v60, 7
    %v62 = vsub.s32 0, %v61
    %v63 = vrot.slane %v53, %v62
    %v64 = vlaneseq
    %v65 = vshrl.u32 %v64, 7
    %v66 = vsub.s32 0, %v65
    %v67 = vrot.slane %v57, %v66
    %v68 = vmul.f32 %v47, %v63
    %v69 = vmul.f32 %v47, %v67
    %v71 = vlaneseq
    %v72 = vshrl.u32 %v71, 7
    %v73 = vsub.s32 0, %v72
    %v74 = vrot.slane %v42, %v73
    %v75 = vlaneseq
    %v76 = vshrl.u32 %v75, 7
    %v77 = vsub.s32 1, %v76
    %v78 = vrot.slane %v42, %v77
    %v81 = vadd.f32 %v74, %v68
    %v82 = vadd.f32 %v78, %v69
    %83 = vset.pattern.permute.xlu0 1
    %84 = vperm.xlu0 %83, %v41
    %v85 = vpop.permute.xlu0 %84
    %v87 = vlaneseq
    %v88 = vshrl.u32 %v87, 7
    %v89 = vsub.s32 1, %v88
    %v90 = vrot.slane %v43, %v89
    %v91 = vlaneseq
    %v92 = vshrl.u32 %v91, 7
    %v93 = vsub.s32 3, %v92
    %v94 = vrot.slane %v43, %v93
    %v97 = vlaneseq
    %v98 = vshrl.u32 %v97, 7
    %v99 = vsub.s32 1, %v98
    %v100 = vrot.slane %v90, %v99
    %v101 = vlaneseq
    %v102 = vshrl.u32 %v101, 7
    %v103 = vsub.s32 1, %v102
    %v104 = vrot.slane %v94, %v103
    %v105 = vmul.f32 %v85, %v100
    %v106 = vmul.f32 %v85, %v104
    %v107 = vadd.f32 %v81, %v105
    %v108 = vadd.f32 %v82, %v106
    %v109 = vmul.f32 %v107, 0.01
    %v110 = vmul.f32 %v108, 0.01
    %v111 = vmax.f32 %v107, %v109
    %v112 = vmax.f32 %v108, %v110
    %v113 = vpack.c.bf16 %v111, %v111
    %v114 = vpack.c.bf16 %v112, %v112
    %v115 = vld [vmem:[#allocation2] sm:$0xff]
    %v116 = vld [vmem:[#allocation2 + $0x8] sm:$0xff]
    %v117 = vld [vmem:[#allocation2 + $0x10] sm:$0xff]
    %v118 = vld [vmem:[#allocation2 + $0x18] sm:$0xff]
    %v119 = vld [vmem:[#allocation2 + $0x20] sm:$0xff]
    %v120 = vld [vmem:[#allocation2 + $0x28] sm:$0xff]
    %v121 = vld [vmem:[#allocation2 + $0x30] sm:$0xff]
    %v122 = vld [vmem:[#allocation2 + $0x38] sm:$0xff]
    %v123 = vld [vmem:[#allocation2 + $0x40] sm:$0xff]
    %v124 = vld [vmem:[#allocation2 + $0x48] sm:$0xff]
    %v125 = vld [vmem:[#allocation2 + $0x50] sm:$0xff]
    %v126 = vld [vmem:[#allocation2 + $0x58] sm:$0xff]
    %v127 = vld [vmem:[#allocation2 + $0x60] sm:$0xff]
    %v128 = vld [vmem:[#allocation2 + $0x68] sm:$0xff]
    %v129 = vld [vmem:[#allocation2 + $0x70] sm:$0xff]
    %v130 = vld [vmem:[#allocation2 + $0x78] sm:$0xff]
    %v131 = vld [vmem:[#allocation2 + $0x80] sm:$0xff]
    %v132 = vld [vmem:[#allocation2 + $0x88] sm:$0xff]
    %v133 = vld [vmem:[#allocation2 + $0x90] sm:$0xff]
    %v134 = vld [vmem:[#allocation2 + $0x98] sm:$0xff]
    %v135 = vld [vmem:[#allocation2 + $0xa0] sm:$0xff]
    %v136 = vld [vmem:[#allocation2 + $0xa8] sm:$0xff]
    %v137 = vld [vmem:[#allocation2 + $0xb0] sm:$0xff]
    %v138 = vld [vmem:[#allocation2 + $0xb8] sm:$0xff]
    %v139 = vld [vmem:[#allocation2 + $0xc0] sm:$0xff]
    %v140 = vld [vmem:[#allocation2 + $0xc8] sm:$0xff]
    %v141 = vld [vmem:[#allocation2 + $0xd0] sm:$0xff]
    %v142 = vld [vmem:[#allocation2 + $0xd8] sm:$0xff]
    %v143 = vld [vmem:[#allocation2 + $0xe0] sm:$0xff]
    %v144 = vld [vmem:[#allocation2 + $0xe8] sm:$0xff]
    %v145 = vld [vmem:[#allocation2 + $0xf0] sm:$0xff]
    %v146 = vld [vmem:[#allocation2 + $0xf8] sm:$0xff]
    %v147 = vld [vmem:[%s4] sm:$0x3]
    %v149 = vlaneseq
    %v150 = vshrl.u32 %v149, 7
    %v151 = vsub.s32 0, %v150
    %v152 = vrot.slane %v147, %v151
    %v153 = vlaneseq
    %v154 = vshrl.u32 %v153, 7
    %v155 = vsub.s32 1, %v154
    %v156 = vrot.slane %v147, %v155
    %v191 = vunpack.c.l.b16 %v115
    %v192 = vunpack.c.h.b16 %v115
    %v193 = vunpack.c.l.b16 %v116
    %v194 = vunpack.c.h.b16 %v116
    %v195 = vunpack.c.l.b16 %v117
    %v196 = vunpack.c.h.b16 %v117
    %v197 = vunpack.c.l.b16 %v118
    %v198 = vunpack.c.h.b16 %v118
    %v199 = vunpack.c.l.b16 %v119
    %v200 = vunpack.c.h.b16 %v119
    %v201 = vunpack.c.l.b16 %v120
    %v202 = vunpack.c.h.b16 %v120
    %v203 = vunpack.c.l.b16 %v121
    %v204 = vunpack.c.h.b16 %v121
    %v205 = vunpack.c.l.b16 %v122
    %v206 = vunpack.c.h.b16 %v122
    %v207 = vunpack.c.l.b16 %v123
    %v208 = vunpack.c.h.b16 %v123
    %v209 = vunpack.c.l.b16 %v124
    %v210 = vunpack.c.h.b16 %v124
    %v211 = vunpack.c.l.b16 %v125
    %v212 = vunpack.c.h.b16 %v125
    %v213 = vunpack.c.l.b16 %v126
    %v214 = vunpack.c.h.b16 %v126
    %v215 = vunpack.c.l.b16 %v127
    %v216 = vunpack.c.h.b16 %v127
    %v217 = vunpack.c.l.b16 %v128
    %v218 = vunpack.c.h.b16 %v128
    %v219 = vunpack.c.l.b16 %v129
    %v220 = vunpack.c.h.b16 %v129
    %v221 = vunpack.c.l.b16 %v130
    %v222 = vunpack.c.h.b16 %v130
    %v223 = vunpack.c.l.b16 %v131
    %v224 = vunpack.c.h.b16 %v131
    %v225 = vunpack.c.l.b16 %v132
    %v226 = vunpack.c.h.b16 %v132
    %v227 = vunpack.c.l.b16 %v133
    %v228 = vunpack.c.h.b16 %v133
    %v229 = vunpack.c.l.b16 %v134
    %v230 = vunpack.c.h.b16 %v134
    %v231 = vunpack.c.l.b16 %v135
    %v232 = vunpack.c.h.b16 %v135
    %v233 = vunpack.c.l.b16 %v136
    %v234 = vunpack.c.h.b16 %v136
    %v235 = vunpack.c.l.b16 %v137
    %v236 = vunpack.c.h.b16 %v137
    %v237 = vunpack.c.l.b16 %v138
    %v238 = vunpack.c.h.b16 %v138
    %v239 = vunpack.c.l.b16 %v139
    %v240 = vunpack.c.h.b16 %v139
    %v241 = vunpack.c.l.b16 %v140
    %v242 = vunpack.c.h.b16 %v140
    %v243 = vunpack.c.l.b16 %v141
    %v244 = vunpack.c.h.b16 %v141
    %v245 = vunpack.c.l.b16 %v142
    %v246 = vunpack.c.h.b16 %v142
    %v247 = vunpack.c.l.b16 %v143
    %v248 = vunpack.c.h.b16 %v143
    %v249 = vunpack.c.l.b16 %v144
    %v250 = vunpack.c.h.b16 %v144
    %v251 = vunpack.c.l.b16 %v145
    %v252 = vunpack.c.h.b16 %v145
    %v253 = vunpack.c.l.b16 %v146
    %v254 = vunpack.c.h.b16 %v146
    %v255 = vpack.c.b16 %v193, %v191
    %v256 = vpack.c.b16 %v194, %v192
    %v257 = vpack.c.b16 %v197, %v195
    %v258 = vpack.c.b16 %v198, %v196
    %v259 = vpack.c.b16 %v201, %v199
    %v260 = vpack.c.b16 %v202, %v200
    %v261 = vpack.c.b16 %v205, %v203
    %v262 = vpack.c.b16 %v206, %v204
    %v263 = vpack.c.b16 %v209, %v207
    %v264 = vpack.c.b16 %v210, %v208
    %v265 = vpack.c.b16 %v213, %v211
    %v266 = vpack.c.b16 %v214, %v212
    %v267 = vpack.c.b16 %v217, %v215
    %v268 = vpack.c.b16 %v218, %v216
    %v269 = vpack.c.b16 %v221, %v219
    %v270 = vpack.c.b16 %v222, %v220
    %v271 = vpack.c.b16 %v225, %v223
    %v272 = vpack.c.b16 %v226, %v224
    %v273 = vpack.c.b16 %v229, %v227
    %v274 = vpack.c.b16 %v230, %v228
    %v275 = vpack.c.b16 %v233, %v231
    %v276 = vpack.c.b16 %v234, %v232
    %v277 = vpack.c.b16 %v237, %v235
    %v278 = vpack.c.b16 %v238, %v236
    %v279 = vpack.c.b16 %v241, %v239
    %v280 = vpack.c.b16 %v242, %v240
    %v281 = vpack.c.b16 %v245, %v243
    %v282 = vpack.c.b16 %v246, %v244
    %v283 = vpack.c.b16 %v249, %v247
    %v284 = vpack.c.b16 %v250, %v248
    %v285 = vpack.c.b16 %v253, %v251
    %v286 = vpack.c.b16 %v254, %v252
    %319 = vmatprep.subr.bf16.mxu0 %v256
    %320 = vmatpush1.bf16.msra.mxu0 %v255
    %321 = vmatprep.subr.bf16.mxu0 %v258
    %322 = vmatpush1.bf16.msra.mxu0 %v257
    %323 = vmatprep.subr.bf16.mxu0 %v260
    %324 = vmatpush1.bf16.msra.mxu0 %v259
    %325 = vmatprep.subr.bf16.mxu0 %v262
    %326 = vmatpush1.bf16.msra.mxu0 %v261
    %327 = vmatprep.subr.bf16.mxu0 %v264
    %328 = vmatpush1.bf16.msra.mxu0 %v263
    %329 = vmatprep.subr.bf16.mxu0 %v266
    %330 = vmatpush1.bf16.msra.mxu0 %v265
    %331 = vmatprep.subr.bf16.mxu0 %v268
    %332 = vmatpush1.bf16.msra.mxu0 %v267
    %333 = vmatprep.subr.bf16.mxu0 %v270
    %334 = vmatpush1.bf16.msra.mxu0 %v269
    %335 = vmatprep.subr.bf16.mxu0 %v272
    %336 = vmatpush1.bf16.msra.mxu0 %v271
    %337 = vmatprep.subr.bf16.mxu0 %v274
    %338 = vmatpush1.bf16.msra.mxu0 %v273
    %339 = vmatprep.subr.bf16.mxu0 %v276
    %340 = vmatpush1.bf16.msra.mxu0 %v275
    %341 = vmatprep.subr.bf16.mxu0 %v278
    %342 = vmatpush1.bf16.msra.mxu0 %v277
    %343 = vmatprep.subr.bf16.mxu0 %v280
    %344 = vmatpush1.bf16.msra.mxu0 %v279
    %345 = vmatprep.subr.bf16.mxu0 %v282
    %346 = vmatpush1.bf16.msra.mxu0 %v281
    %347 = vmatprep.subr.bf16.mxu0 %v284
    %348 = vmatpush1.bf16.msra.mxu0 %v283
    %349 = vmatprep.subr.bf16.mxu0 %v286
    %350 = vmatpush1.bf16.msra.mxu0 %v285
    %351 = vmatprep.mubr.bf16.mxu0 %v114
    %352 = vmatmul.mubr.bf16.gmra.mrb[0].mxu0 %v113
    %v353 = vpop.f32.mrb[0].mxu0
    %v354 = vadd.f32 %v152, %v353
    %v355 = vpop.f32.mrb[0].mxu0
    %v356 = vadd.f32 %v156, %v355
    %v357 = vpop.f32.mrb[0].mxu0
    %v358 = vpop.f32.mrb[0].mxu0
    %359 = vdwg.mxu0
    %v360 = vmul.f32 %v354, 0.01
    %v361 = vmul.f32 %v356, 0.01
    %v362 = vmax.f32 %v354, %v360
    %v363 = vmax.f32 %v356, %v361
    %v364 = vpack.c.bf16 %v362, %v362
    %v365 = vpack.c.bf16 %v363, %v363
    %v366 = vld [vmem:[%s5] sm:$0xf]
    %v367 = vld [vmem:[%s5 + $0x4] sm:$0xf]
    %v368 = vld [vmem:[%s5 + $0x8] sm:$0xf]
    %v369 = vld [vmem:[%s5 + $0xc] sm:$0xf]
    %v370 = vld [vmem:[%s5 + $0x10] sm:$0xf]
    %v371 = vld [vmem:[%s5 + $0x14] sm:$0xf]
    %v372 = vld [vmem:[%s5 + $0x18] sm:$0xf]
    %v373 = vld [vmem:[%s5 + $0x1c] sm:$0xf]
    %v374 = vld [vmem:[%s5 + $0x20] sm:$0xf]
    %v375 = vld [vmem:[%s5 + $0x24] sm:$0xf]
    %v376 = vld [vmem:[%s5 + $0x28] sm:$0xf]
    %v377 = vld [vmem:[%s5 + $0x2c] sm:$0xf]
    %v378 = vld [vmem:[%s5 + $0x30] sm:$0xf]
    %v379 = vld [vmem:[%s5 + $0x34] sm:$0xf]
    %v380 = vld [vmem:[%s5 + $0x38] sm:$0xf]
    %v381 = vld [vmem:[%s5 + $0x3c] sm:$0xf]
    %v382 = vld [vmem:[%s5 + $0x40] sm:$0xf]
    %v383 = vld [vmem:[%s5 + $0x44] sm:$0xf]
    %v384 = vld [vmem:[%s5 + $0x48] sm:$0xf]
    %v385 = vld [vmem:[%s5 + $0x4c] sm:$0xf]
    %v386 = vld [vmem:[%s5 + $0x50] sm:$0xf]
    %v387 = vld [vmem:[%s5 + $0x54] sm:$0xf]
    %v388 = vld [vmem:[%s5 + $0x58] sm:$0xf]
    %v389 = vld [vmem:[%s5 + $0x5c] sm:$0xf]
    %v390 = vld [vmem:[%s5 + $0x60] sm:$0xf]
    %v391 = vld [vmem:[%s5 + $0x64] sm:$0xf]
    %v392 = vld [vmem:[%s5 + $0x68] sm:$0xf]
    %v393 = vld [vmem:[%s5 + $0x6c] sm:$0xf]
    %v394 = vld [vmem:[%s5 + $0x70] sm:$0xf]
    %v395 = vld [vmem:[%s5 + $0x74] sm:$0xf]
    %v396 = vld [vmem:[%s5 + $0x78] sm:$0xf]
    %v397 = vld [vmem:[%s5 + $0x7c] sm:$0xf]
    %v398 = vld [vmem:[%s6] sm:$0x1]
    %v400 = vlaneseq
    %v401 = vshrl.u32 %v400, 7
    %v402 = vsub.s32 0, %v401
    %v403 = vrot.slane %v398, %v402
    %v437 = vunpack.c.l.b16 %v366
    %v438 = vunpack.c.l.b16 %v367
    %v439 = vunpack.c.l.b16 %v368
    %v440 = vunpack.c.l.b16 %v369
    %v441 = vunpack.c.l.b16 %v370
    %v442 = vunpack.c.l.b16 %v371
    %v443 = vunpack.c.l.b16 %v372
    %v444 = vunpack.c.l.b16 %v373
    %v445 = vunpack.c.l.b16 %v374
    %v446 = vunpack.c.l.b16 %v375
    %v447 = vunpack.c.l.b16 %v376
    %v448 = vunpack.c.l.b16 %v377
    %v449 = vunpack.c.l.b16 %v378
    %v450 = vunpack.c.l.b16 %v379
    %v451 = vunpack.c.l.b16 %v380
    %v452 = vunpack.c.l.b16 %v381
    %v453 = vunpack.c.l.b16 %v382
    %v454 = vunpack.c.l.b16 %v383
    %v455 = vunpack.c.l.b16 %v384
    %v456 = vunpack.c.l.b16 %v385
    %v457 = vunpack.c.l.b16 %v386
    %v458 = vunpack.c.l.b16 %v387
    %v459 = vunpack.c.l.b16 %v388
    %v460 = vunpack.c.l.b16 %v389
    %v461 = vunpack.c.l.b16 %v390
    %v462 = vunpack.c.l.b16 %v391
    %v463 = vunpack.c.l.b16 %v392
    %v464 = vunpack.c.l.b16 %v393
    %v465 = vunpack.c.l.b16 %v394
    %v466 = vunpack.c.l.b16 %v395
    %v467 = vunpack.c.l.b16 %v396
    %v468 = vunpack.c.l.b16 %v397
    %v469 = vpack.c.b16 %v438, %v437
    %v470 = vpack.c.b16 %v440, %v439
    %v471 = vpack.c.b16 %v442, %v441
    %v472 = vpack.c.b16 %v444, %v443
    %v473 = vpack.c.b16 %v446, %v445
    %v474 = vpack.c.b16 %v448, %v447
    %v475 = vpack.c.b16 %v450, %v449
    %v476 = vpack.c.b16 %v452, %v451
    %v477 = vpack.c.b16 %v454, %v453
    %v478 = vpack.c.b16 %v456, %v455
    %v479 = vpack.c.b16 %v458, %v457
    %v480 = vpack.c.b16 %v460, %v459
    %v481 = vpack.c.b16 %v462, %v461
    %v482 = vpack.c.b16 %v464, %v463
    %v483 = vpack.c.b16 %v466, %v465
    %v484 = vpack.c.b16 %v468, %v467
    %501 = vmatprep.subr.bf16.mxu0 0
    %502 = vmatpush1.bf16.msra.mxu0 %v469
    %503 = vmatprep.subr.bf16.mxu0 0
    %504 = vmatpush1.bf16.msra.mxu0 %v470
    %505 = vmatprep.subr.bf16.mxu0 0
    %506 = vmatpush1.bf16.msra.mxu0 %v471
    %507 = vmatprep.subr.bf16.mxu0 0
    %508 = vmatpush1.bf16.msra.mxu0 %v472
    %509 = vmatprep.subr.bf16.mxu0 0
    %510 = vmatpush1.bf16.msra.mxu0 %v473
    %511 = vmatprep.subr.bf16.mxu0 0
    %512 = vmatpush1.bf16.msra.mxu0 %v474
    %513 = vmatprep.subr.bf16.mxu0 0
    %514 = vmatpush1.bf16.msra.mxu0 %v475
    %515 = vmatprep.subr.bf16.mxu0 0
    %516 = vmatpush1.bf16.msra.mxu0 %v476
    %517 = vmatprep.subr.bf16.mxu0 0
    %518 = vmatpush1.bf16.msra.mxu0 %v477
    %519 = vmatprep.subr.bf16.mxu0 0
    %520 = vmatpush1.bf16.msra.mxu0 %v478
    %521 = vmatprep.subr.bf16.mxu0 0
    %522 = vmatpush1.bf16.msra.mxu0 %v479
    %523 = vmatprep.subr.bf16.mxu0 0
    %524 = vmatpush1.bf16.msra.mxu0 %v480
    %525 = vmatprep.subr.bf16.mxu0 0
    %526 = vmatpush1.bf16.msra.mxu0 %v481
    %527 = vmatprep.subr.bf16.mxu0 0
    %528 = vmatpush1.bf16.msra.mxu0 %v482
    %529 = vmatprep.subr.bf16.mxu0 0
    %530 = vmatpush1.bf16.msra.mxu0 %v483
    %531 = vmatprep.subr.bf16.mxu0 0
    %532 = vmatpush1.bf16.msra.mxu0 %v484
    %533 = vmatprep.mubr.bf16.mxu0 %v365
    %534 = vmatmul.mubr.bf16.gmra.mrb[0].mxu0 %v364
    %v535 = vpop.f32.mrb[0].mxu0
    %v536 = vadd.f32 %v403, %v535
    %v537 = vpop.f32.mrb[0].mxu0
    %v538 = vpop.f32.mrb[0].mxu0
    %v539 = vpop.f32.mrb[0].mxu0
    %540 = vdwg.mxu0
    %v541 = vsub.f32 0.0, %v536
    %v542 = vmul.f32 %v541, 1.442695
    %v543 = vpow.pop %v542
    %v544 = vadd.f32 %v543, 1.0
    %v545 = vrcp.pop %v544
    %vm546 = vcmask 15360
    %547 = vst.msk [vmem:[%s7] sm:$0xff] %vm546, %v545
    // Predicated region
    $region34: #{soh_simulate.1} parent=1 // pred_check
      _
    $region35: #{soh_simulate.1} parent=1 // pred_check_branch
      %549 = sbr.rel (0) target = $region37
    $region36: #{soh_simulate.1} parent=1 // pred_region
      _
    $region37: #{soh_simulate.1} parent=1 // pred_fallthru
      _
    // Predicated region
    $region38: #{soh_simulate.1} parent=1 // pred_check
      _
    $region39: #{soh_simulate.1} parent=1 // pred_check_branch
      %551 = sbr.rel (0) target = $region41
    $region40: #{soh_simulate.1} parent=1 // pred_region
      _
    $region41: #{soh_simulate.1} parent=1 // pred_fallthru
      _
    %552 = vsyncpa [#allocation3], 1

</llo_original>
